<compile_context>
chip_gen: v5e
topology: v5e:2x2
jax: 0.10.0
libtpu: 0.0.40
codegen_flags: <defaults>
</compile_context>

<pallas_src>
import jax
import jax.numpy as jnp
from jax.experimental import pallas as pl
from jax.experimental.pallas import tpu as pltpu


def _round_up(x, m):
    return ((x + m - 1) // m) * m


def _pick_tile(n, granule, preferred, min_tile):
    """Tile size for an axis of length n.

    Uses the full (granule-aligned) axis when it fits within `preferred`;
    otherwise picks the largest power-of-two tile whose padding waste is
    <= ~12.5% of the axis, falling back to the least-waste candidate.
    """
    ng = _round_up(n, granule)
    if ng <= preferred:
        return ng
    cands = []
    t = preferred
    while t >= min_tile:
        cands.append(t)
        t //= 2
    tol = ng // 8
    for t in cands:
        if _round_up(ng, t) - ng <= tol:
            return t
    return min(cands, key=lambda t: _round_up(ng, t) - ng)


def _linear_kernel(x_ref, wt_ref, b_ref, o_ref):
    # x_ref: (tm, tk) compute dtype, wt_ref: (tk, tn) compute dtype,
    # b_ref: (1, tn) f32, o_ref: (tm, tn) f32 (resident across the k axis).
    k = pl.program_id(2)

    @pl.when(k == 0)
    def _():
        # Initialize the resident f32 output tile with the bias; subsequent
        # k-steps accumulate partial products straight into it (no scratch).
        o_ref[...] = jnp.broadcast_to(b_ref[...], o_ref.shape)

    # MXU matmul: (tm, tk) x (tk, tn) -> (tm, tn), f32 accumulation.
    o_ref[...] += jax.lax.dot_general(
        x_ref[...],
        wt_ref[...],
        dimension_numbers=(((1,), (0,)), ((), ())),
        preferred_element_type=jnp.float32,
    )


def pack_linear_params(w, b, *, compute_dtype=jnp.bfloat16):
    """One-time weight prep (hoisted out of the per-call hot path).

    w: (C, D) in PyTorch nn.Linear layout, b: (C,).
    Returns the pre-transposed, padded, casted weight (Dp, Cp), the padded
    f32 bias (1, Cp), and the tiling metadata.
    """
    C, D = w.shape
    assert b.shape == (C,)
    tn = _pick_tile(C, 128, 256, 128)   # lane / output-class axis
    tk = _pick_tile(D, 128, 512, 128)   # contraction axis
    Cp = _round_up(C, tn)
    Dp = _round_up(D, tk)
    wt_p = jnp.pad(w.T, ((0, Dp - D), (0, Cp - C))).astype(compute_dtype)
    b_p = jnp.pad(b.astype(jnp.float32), (0, Cp - C)).reshape(1, Cp)
    return dict(wt=wt_p, bias=b_p, C=C, D=D, Cp=Cp, Dp=Dp, tn=tn, tk=tk,
                compute_dtype=compute_dtype)


def linear_forward_packed(x, params):
    """y = x @ W^T + b using pre-packed params (see pack_linear_params)."""
    B, D = x.shape
    assert D == params["D"], (D, params["D"])
    C, Cp, Dp = params["C"], params["Cp"], params["Dp"]
    tn, tk = params["tn"], params["tk"]
    compute_dtype = params["compute_dtype"]
    wt_p, b_p = params["wt"], params["bias"]

    # Row-tile: the whole batch is one tile when it fits (weight streams from
    # HBM exactly once); otherwise bounded-waste power-of-two tiles.
    sub = 16 if compute_dtype == jnp.bfloat16 else 8
    tm = _pick_tile(B, sub, 512, 64)
    Bp = _round_up(B, tm)

    # v7x megacore: if the grid would be (1, 1, K), split N so both
    # TensorCores get a block (free when memory-bound).
    if Bp // tm == 1 and Cp // tn == 1 and Cp >= 256 and (Cp // 2) % 128 == 0:
        tn = Cp // 2

    x_p = jnp.pad(x, ((0, Bp - B), (0, Dp - D))).astype(compute_dtype)

    grid = (Bp // tm, Cp // tn, Dp // tk)
    itemsize = jnp.dtype(compute_dtype).itemsize

    out_p = pl.pallas_call(
        _linear_kernel,
        out_shape=jax.ShapeDtypeStruct((Bp, Cp), jnp.float32),
        grid_spec=pltpu.PrefetchScalarGridSpec(
            num_scalar_prefetch=0,
            grid=grid,
            in_specs=[
                pl.BlockSpec((tm, tk), lambda i, j, k: (i, k)),   # x tile
                pl.BlockSpec((tk, tn), lambda i, j, k: (k, j)),   # W^T tile
                pl.BlockSpec((1, tn), lambda i, j, k: (0, j)),    # bias tile
            ],
            out_specs=pl.BlockSpec((tm, tn), lambda i, j, k: (i, j)),
        ),
        compiler_params=pltpu.CompilerParams(
            dimension_semantics=("parallel", "parallel", "arbitrary"),
        ),
        cost_estimate=pl.CostEstimate(
            flops=2 * Bp * Dp * Cp,
            transcendentals=0,
            bytes_accessed=(Bp * Dp * itemsize * (Cp // tn)
                            + Dp * Cp * itemsize * (Bp // tm)
                            + Cp * 4 + Bp * Cp * 4),
        ),
        # TODO(synk): if a profile at large Dp//tk shows exposed weight DMA,
        # add pipeline_mode=pl.Buffered(3) on the W^T BlockSpec.
    )(x_p, wt_p, b_p)

    # Slice padding back off; output stays f32 (matches the PyTorch module).
    return out_p[:B, :C]


def linear_forward(x, w, b, *, compute_dtype=jnp.bfloat16, force_pallas=False):
    """Convenience one-shot wrapper.  For repeated calls with fixed weights,
    call pack_linear_params(...) once and linear_forward_packed(...) per step.
    """
    B, D = x.shape
    C = w.shape[0]
    # Small-shape escape hatch: a single grid step is pure fixed overhead and
    # XLA's fused dot is strictly faster there on all generations.
    if not force_pallas and B * D * C < (1 << 20):
        return (x.astype(jnp.float32) @ w.T.astype(jnp.float32)
                + b.astype(jnp.float32))
    return linear_forward_packed(
        x, pack_linear_params(w, b, compute_dtype=compute_dtype))


if __name__ == "__main__":
    # Small shapes consistent with the module: batch=8, input_size=32, n_classes=16.
    batch, input_size, n_classes = 8, 32, 16

    key = jax.random.PRNGKey(0)
    kx, kw, kb = jax.random.split(key, 3)

    x = jax.random.normal(kx, (batch, input_size), dtype=jnp.float32)
    # Deterministic param init (mimics nn.Linear's uniform(-1/sqrt(D), 1/sqrt(D))).
    bound = 1.0 / jnp.sqrt(jnp.float32(input_size))
    w = jax.random.uniform(kw, (n_classes, input_size), dtype=jnp.float32,
                           minval=-bound, maxval=bound)
    b = jax.random.uniform(kb, (n_classes,), dtype=jnp.float32,
                           minval=-bound, maxval=bound)

    # Pack the weights once (hoisted transpose/pad/cast), then run the Pallas
    # kernel directly so the kernel itself is exercised (no XLA fallback).
    params = pack_linear_params(w, b, compute_dtype=jnp.bfloat16)
    y = linear_forward_packed(x, params)
    y = jax.block_until_ready(y)
    assert y.shape == (batch, n_classes)
    assert y.dtype == jnp.float32

    # Tight check vs. a bf16-rounded reference (same operand rounding, f32 acc).
    xe = x.astype(jnp.bfloat16).astype(jnp.float32)
    we = w.astype(jnp.bfloat16).astype(jnp.float32)
    y_ref_bf16 = xe @ we.T + b
    assert jnp.allclose(y, y_ref_bf16, atol=1e-4, rtol=1e-4), \
        float(jnp.max(jnp.abs(y - y_ref_bf16)))

    # Loose check vs. the pure f32 PyTorch-equivalent reference.
    y_ref_f32 = x @ w.T + b
    assert jnp.allclose(y, y_ref_f32, atol=3e-2, rtol=3e-2), \
        float(jnp.max(jnp.abs(y - y_ref_f32)))

    print("KERNEL_OK")
</pallas_src>

<mosaic_0001>
module attributes {stable_mosaic.version = 11 : i64} {
  func.func @_linear_kernel(%arg0: i32, %arg1: i32, %arg2: i32, %arg3: memref<16x128xbf16, #tpu.memory_space<vmem>>, %arg4: memref<128x128xbf16, #tpu.memory_space<vmem>>, %arg5: memref<1x128xf32, #tpu.memory_space<vmem>>, %arg6: memref<16x128xf32, #tpu.memory_space<vmem>>) attributes {dimension_semantics = [#tpu.dimension_semantics<parallel>, #tpu.dimension_semantics<parallel>, #tpu.dimension_semantics<arbitrary>], iteration_bounds = array<i64: 1, 1, 1>, scalar_prefetch = 0 : i64, scratch_operands = 0 : i64, tpu.core_type = #tpu.core_type<tc>, window_params = [{transform_indices = @transform_0, window_bounds = array<i64: 16, 128>}, {transform_indices = @transform_1, window_bounds = array<i64: 128, 128>}, {transform_indices = @transform_2, window_bounds = array<i64: 1, 128>}, {transform_indices = @transform_3, window_bounds = array<i64: 16, 128>}]} {
    %c0_i32 = arith.constant 0 : i32
    %0 = arith.cmpi eq, %arg2, %c0_i32 : i32
    %1 = arith.extui %0 : i1 to i32
    %c0_i32_0 = arith.constant 0 : i32
    %2 = arith.cmpi ne, %1, %c0_i32_0 : i32
    scf.if %2 {
      %c0_8 = arith.constant 0 : index
      %c0_9 = arith.constant 0 : index
      %9 = vector.load %arg5[%c0_8, %c0_9] : memref<1x128xf32, #tpu.memory_space<vmem>>, vector<1x128xf32>
      %10 = vector.shape_cast %9 : vector<1x128xf32> to vector<1x128xf32>
      %11 = vector.broadcast %10 : vector<1x128xf32> to vector<16x128xf32>
      %c0_10 = arith.constant 0 : index
      %c0_11 = arith.constant 0 : index
      %12 = vector.load %arg6[%c0_10, %c0_11] : memref<16x128xf32, #tpu.memory_space<vmem>>, vector<16x128xf32>
      tpu.vector_store %arg6[%c0_10, %c0_11], %11 {strides = array<i32>} : memref<16x128xf32, #tpu.memory_space<vmem>>, vector<16x128xf32>,
    } else {
    }
    %c0 = arith.constant 0 : index
    %c0_1 = arith.constant 0 : index
    %3 = vector.load %arg6[%c0, %c0_1] : memref<16x128xf32, #tpu.memory_space<vmem>>, vector<16x128xf32>
    %c0_2 = arith.constant 0 : index
    %c0_3 = arith.constant 0 : index
    %4 = vector.load %arg3[%c0_2, %c0_3] : memref<16x128xbf16, #tpu.memory_space<vmem>>, vector<16x128xbf16>
    %c0_4 = arith.constant 0 : index
    %c0_5 = arith.constant 0 : index
    %5 = vector.load %arg4[%c0_4, %c0_5] : memref<128x128xbf16, #tpu.memory_space<vmem>>, vector<128x128xbf16>
    %cst = arith.constant dense<0.000000e+00> : vector<16x128xf32>
    %6 = tpu.matmul %4, %5, %cst {dimension_numbers = #tpu.dot_dimension_numbers<[1], [0], [0], [1], [0, 0, 1, 1], [], []>} : vector<16x128xbf16>, vector<128x128xbf16>, vector<16x128xf32> -> vector<16x128xf32>
    %7 = arith.addf %3, %6 : vector<16x128xf32>
    %c0_6 = arith.constant 0 : index
    %c0_7 = arith.constant 0 : index
    %8 = vector.load %arg6[%c0_6, %c0_7] : memref<16x128xf32, #tpu.memory_space<vmem>>, vector<16x128xf32>
    tpu.vector_store %arg6[%c0_6, %c0_7], %7 {strides = array<i32>} : memref<16x128xf32, #tpu.memory_space<vmem>>, vector<16x128xf32>,
    return
  }
  func.func @transform_0(%arg0: i32, %arg1: i32, %arg2: i32) -> (i32, i32) {
    %c0_i32 = arith.constant 0 : i32
    return %arg0, %arg2 : i32, i32
  }
  func.func @transform_1(%arg0: i32, %arg1: i32, %arg2: i32) -> (i32, i32) {
    %c0_i32 = arith.constant 0 : i32
    return %arg2, %arg1 : i32, i32
  }
  func.func @transform_2(%arg0: i32, %arg1: i32, %arg2: i32) -> (i32, i32) {
    %c0_i32 = arith.constant 0 : i32
    %c0_i32_0 = arith.constant 0 : i32
    return %c0_i32, %arg1 : i32, i32
  }
  func.func @transform_3(%arg0: i32, %arg1: i32, %arg2: i32) -> (i32, i32) {
    %c0_i32 = arith.constant 0 : i32
    return %arg0, %arg1 : i32, i32
  }
}

</mosaic_0001>

<llo_original>
// kernel: tpu_custom_call.1
$region0: #{tpu_custom_call.1}
  #allocation0 [shape = 'u32[]', space=smem, size = 0x4, offset = 0x4, fixed_abs, tag = 'smem constant byte address 0x4 - core index']
  #allocation1 [shape = 'u32[72,128]{1,0:T(1,128)}', space=vmem, size = 0x9000, scoped, tag = 'internal scratch']
  %s0 = inlined_call_operand.hbm [shape: bf16[16,128], index: 0, kind: input, shape index: {}]
  %s1 = inlined_call_operand.hbm [shape: bf16[128,128], index: 1, kind: input, shape index: {}]
  %s2 = inlined_call_operand.vmem [shape: f32[1,128], index: 2, kind: input, shape index: {}]
  %s3 = inlined_call_operand.hbm [shape: f32[16,128], index: 3, kind: output, shape index: {}]
  %s4 = sld [smem:[#allocation0]]
  $region34: #{tpu_custom_call.1} parent=0
    _
  %s6 = ssub.s32 1, %s4
  %s7 = scalar_select 0, %s6, %s4
  $region1: #{tpu_custom_call.1} parent=0
    #allocation2 [shape = 'u8[4096]{0}', space=vmem, size = 0x1000, scoped, tag = 'input window, operand 0, single buffered']
    #allocation3 [shape = 's32[1]{0}', space=sflag, size = 0x4, scoped, tag = 'scoped memory for tpu_custom_call.1']
    #allocation4 [shape = 's32[1]{0}', space=sflag, size = 0x4, scoped, tag = 'scoped memory for tpu_custom_call.1']
    #allocation5 [shape = 'u8[32768]{0}', space=vmem, size = 0x8000, scoped, tag = 'input window, operand 1, single buffered']
    #allocation6 [shape = 's32[1]{0}', space=sflag, size = 0x4, scoped, tag = 'scoped memory for tpu_custom_call.1']
    #allocation7 [shape = 'u8[8192]{0}', space=vmem, size = 0x2000, scoped, tag = 'output window, operand 0, single buffered']
    %8 = vsyncpa [#allocation3], 0
    %9 = vsyncpa [#allocation6], 0
    %10 = vsyncpa [#allocation4], 0
    // Predicated region
    $region2: #{tpu_custom_call.1} parent=1 // pred_check
      _
    $region3: #{tpu_custom_call.1} parent=1 // pred_check_branch
      %12 = sbr.rel (0) target = $region5
    $region4: #{tpu_custom_call.1} parent=1 // pred_region
      %14 = vsyncadd [#allocation3], 0
      %s15 = sshll.u32 %s0, 4
      %s16 = int_to_ptr.hbm [resolvable:$true] %s15
      %s17 = sshll.u32 [#allocation2], 4
      %s18 = int_to_ptr.vmem [resolvable:$true] %s17
      %23 = dma.hbm_to_vmem [thread:$0]  %s16, 128, %s18, [#allocation3], 64, 64, 4
    $region5: #{tpu_custom_call.1} parent=1 // pred_fallthru
      _
    // Predicated region
    $region6: #{tpu_custom_call.1} parent=1 // pred_check
      _
    $region7: #{tpu_custom_call.1} parent=1 // pred_check_branch
      %25 = sbr.rel (0) target = $region9
    $region8: #{tpu_custom_call.1} parent=1 // pred_region
      %27 = vsyncadd [#allocation6], 0
      %s28 = sshll.u32 %s1, 4
      %s29 = int_to_ptr.hbm [resolvable:$true] %s28
      %s30 = sshll.u32 [#allocation5], 4
      %s31 = int_to_ptr.vmem [resolvable:$true] %s30
      %36 = dma.hbm_to_vmem [thread:$0]  %s29, 1024, %s31, [#allocation6], 64, 64, 4
    $region9: #{tpu_custom_call.1} parent=1 // pred_fallthru
      _
    // Predicated region
    $region10: #{tpu_custom_call.1} parent=1 // pred_check
      _
    $region11: #{tpu_custom_call.1} parent=1 // pred_check_branch
      %38 = sbr.rel (0) target = $region13
    $region12: #{tpu_custom_call.1} parent=1 // pred_region
      _
    $region13: #{tpu_custom_call.1} parent=1 // pred_fallthru
      _
    // Predicated region
    $region14: #{tpu_custom_call.1} parent=1 // pred_check
      _
    $region15: #{tpu_custom_call.1} parent=1 // pred_check_branch
      %40 = sbr.rel (0) target = $region17
    $region16: #{tpu_custom_call.1} parent=1 // pred_region
      %42 = dma.done [#allocation3], 128
    $region17: #{tpu_custom_call.1} parent=1 // pred_fallthru
      _
    // Predicated region
    $region18: #{tpu_custom_call.1} parent=1 // pred_check
      _
    $region19: #{tpu_custom_call.1} parent=1 // pred_check_branch
      %44 = sbr.rel (0) target = $region21
    $region20: #{tpu_custom_call.1} parent=1 // pred_region
      %46 = dma.done [#allocation6], 1024
    $region21: #{tpu_custom_call.1} parent=1 // pred_fallthru
      _
    %p47 = scmp.eq.s32.totalorder 0, 0
    // Predicated region
    $region22: #{tpu_custom_call.1} parent=1 // pred_check
      %p48 = pneg %p47
    $region23: #{tpu_custom_call.1} parent=1 // pred_check_branch
      %50 = sbr.rel (%p48) target = $region25
    $region24: #{tpu_custom_call.1} parent=1 // pred_region
      %v51 = vld [vmem:[%s2] sm:$0x1]
      %v53 = vperm.slane %v51, 0
      %55 = vst [vmem:[#allocation7] sm:$0xff] %v53
      %56 = vst [vmem:[#allocation7 + $0x8] sm:$0xff] %v53
    $region25: #{tpu_custom_call.1} parent=1 // pred_fallthru
      _
    %v57 = vld [vmem:[#allocation7] sm:$0xff]
    %v58 = vld [vmem:[#allocation7 + $0x8] sm:$0xff]
    %v59 = vld [vmem:[#allocation2] sm:$0xf]
    %v60 = vld [vmem:[#allocation2 + $0x4] sm:$0xf]
    %v61 = vld [vmem:[#allocation5] sm:$0xf]
    %v62 = vld [vmem:[#allocation5 + $0x4] sm:$0xf]
    %v63 = vld [vmem:[#allocation5 + $0x8] sm:$0xf]
    %v64 = vld [vmem:[#allocation5 + $0xc] sm:$0xf]
    %v65 = vld [vmem:[#allocation5 + $0x10] sm:$0xf]
    %v66 = vld [vmem:[#allocation5 + $0x14] sm:$0xf]
    %v67 = vld [vmem:[#allocation5 + $0x18] sm:$0xf]
    %v68 = vld [vmem:[#allocation5 + $0x1c] sm:$0xf]
    %v69 = vld [vmem:[#allocation5 + $0x20] sm:$0xf]
    %v70 = vld [vmem:[#allocation5 + $0x24] sm:$0xf]
    %v71 = vld [vmem:[#allocation5 + $0x28] sm:$0xf]
    %v72 = vld [vmem:[#allocation5 + $0x2c] sm:$0xf]
    %v73 = vld [vmem:[#allocation5 + $0x30] sm:$0xf]
    %v74 = vld [vmem:[#allocation5 + $0x34] sm:$0xf]
    %v75 = vld [vmem:[#allocation5 + $0x38] sm:$0xf]
    %v76 = vld [vmem:[#allocation5 + $0x3c] sm:$0xf]
    %v79 = vunpack.c.l.b16 %v59
    %v80 = vunpack.c.l.b16 %v60
    %v81 = vpack.c.b16 %v80, %v79
    %v99 = vunpack.c.l.b16 %v61
    %v100 = vunpack.c.l.b16 %v62
    %v101 = vunpack.c.l.b16 %v63
    %v102 = vunpack.c.l.b16 %v64
    %v103 = vunpack.c.l.b16 %v65
    %v104 = vunpack.c.l.b16 %v66
    %v105 = vunpack.c.l.b16 %v67
    %v106 = vunpack.c.l.b16 %v68
    %v107 = vunpack.c.l.b16 %v69
    %v108 = vunpack.c.l.b16 %v70
    %v109 = vunpack.c.l.b16 %v71
    %v110 = vunpack.c.l.b16 %v72
    %v111 = vunpack.c.l.b16 %v73
    %v112 = vunpack.c.l.b16 %v74
    %v113 = vunpack.c.l.b16 %v75
    %v114 = vunpack.c.l.b16 %v76
    %v115 = vpack.c.b16 %v100, %v99
    %v116 = vpack.c.b16 %v102, %v101
    %v117 = vpack.c.b16 %v104, %v103
    %v118 = vpack.c.b16 %v106, %v105
    %v119 = vpack.c.b16 %v108, %v107
    %v120 = vpack.c.b16 %v110, %v109
    %v121 = vpack.c.b16 %v112, %v111
    %v122 = vpack.c.b16 %v114, %v113
    %131 = vmatpush.bf16.msra.mxu0 %v122
    %132 = vmatpush.bf16.msra.mxu0 %v121
    %133 = vmatpush.bf16.msra.mxu0 %v120
    %134 = vmatpush.bf16.msra.mxu0 %v119
    %135 = vmatpush.bf16.msra.mxu0 %v118
    %136 = vmatpush.bf16.msra.mxu0 %v117
    %137 = vmatpush.bf16.msra.mxu0 %v116
    %138 = vmatpush.bf16.msra.mxu0 %v115
    %139 = vmatmul.bf16.gmra.mxu0 %v81
    %v140 = vpop.f32.mrf.mxu0
    %v141 = vadd.f32 0.0, %v140
    %v142 = vpop.f32.mrf.mxu0
    %v143 = vadd.f32 0.0, %v142
    %144 = vdwg.mxu0
    %v145 = vadd.f32 %v57, %v141
    %v146 = vadd.f32 %v58, %v143
    %147 = vst [vmem:[#allocation7] sm:$0xff] %v145
    %148 = vst [vmem:[#allocation7 + $0x8] sm:$0xff] %v146
    // Predicated region
    $region26: #{tpu_custom_call.1} parent=1 // pred_check
      _
    $region27: #{tpu_custom_call.1} parent=1 // pred_check_branch
      %150 = sbr.rel (0) target = $region29
    $region28: #{tpu_custom_call.1} parent=1 // pred_region
      %152 = vsyncadd [#allocation4], 0
      %s153 = sshll.u32 [#allocation7], 4
      %s154 = int_to_ptr.vmem [resolvable:$true] %s153
      %s155 = sshll.u32 %s3, 4
      %s156 = int_to_ptr.hbm [resolvable:$true] %s155
      %161 = dma.vmem_to_hbm [thread:$0]  %s154, 256, %s156, [#allocation4], 128, 128, 8
    $region29: #{tpu_custom_call.1} parent=1 // pred_fallthru
      _
    // Predicated region
    $region30: #{tpu_custom_call.1} parent=1 // pred_check
      _
    $region31: #{tpu_custom_call.1} parent=1 // pred_check_branch
      %163 = sbr.rel (0) target = $region33
    $region32: #{tpu_custom_call.1} parent=1 // pred_region
      %165 = dma.done [#allocation4], 256
    $region33: #{tpu_custom_call.1} parent=1 // pred_fallthru
      _
    %166 = vsyncpa [#allocation3], 1
    %167 = vsyncpa [#allocation6], 1
    %168 = vsyncpa [#allocation4], 1

</llo_original>
